<compile_context>
chip_gen: v7x
topology: tpu7x:2x2x1
jax: 0.10.0
libtpu: 0.0.40
codegen_flags: <defaults>
</compile_context>

<pallas_src>
import jax
import jax.numpy as jnp
from jax.experimental import pallas as pl
from jax.experimental.pallas import tpu as pltpu

_LANES = 128


def _critic_kernel_fused(s_ref, a_ref,
                         w1s_ref, w1a_ref, b1_ref,
                         w2_ref, b2_ref,
                         w3_ref, b3_ref,
                         out_ref):
    """Twin-Q MLP on one [TB, *] batch tile; both heads fused into wide dots (2H <= 128)."""
    # Layer 1 (split-K: states / actions streamed separately, no HBM concat).
    # TODO(synk): an in-VMEM lane-concat of s/a + a single K=S+A dot would save one MXU
    # push/drain per step; kept split-K to avoid relayout cost at these tiny K dims.
    h = jnp.dot(s_ref[...], w1s_ref[...], preferred_element_type=jnp.float32)
    h = h + jnp.dot(a_ref[...], w1a_ref[...], preferred_element_type=jnp.float32)
    h = jnp.maximum(h + b1_ref[...], 0.0)                                    # [TB, 2H] f32
    # Layer 2 (block-diagonal -> both heads in one dot).
    h2 = jnp.dot(h.astype(w2_ref.dtype), w2_ref[...],
                 preferred_element_type=jnp.float32) + b2_ref[...]
    h2 = jnp.maximum(h2, 0.0)                                                # [TB, 2H] f32
    # Layer 3 (block-diagonal [2H,2] -> packed (q1|q2), single store).
    q = jnp.dot(h2.astype(w3_ref.dtype), w3_ref[...],
                preferred_element_type=jnp.float32) + b3_ref[...]
    out_ref[...] = q.astype(out_ref.dtype)                                   # [TB, 2]


def _critic_kernel_perhead(s_ref, a_ref,
                           w1s1_ref, w1a1_ref, b11_ref, w21_ref, b21_ref, w31_ref, b31_ref,
                           w1s2_ref, w1a2_ref, b12_ref, w22_ref, b22_ref, w32_ref, b32_ref,
                           out_ref):
    """Twin-Q MLP, one head at a time (2H > 128 lanes: block-diagonal zeros would double
    the MXU MAC count and w2's VMEM footprint)."""
    def head(w1s, w1a, b1, w2, b2, w3, b3):
        h = jnp.dot(s_ref[...], w1s[...], preferred_element_type=jnp.float32)
        h = h + jnp.dot(a_ref[...], w1a[...], preferred_element_type=jnp.float32)
        h = jnp.maximum(h + b1[...], 0.0)
        h = jnp.dot(h.astype(w2.dtype), w2[...], preferred_element_type=jnp.float32) + b2[...]
        h = jnp.maximum(h, 0.0)
        return jnp.dot(h.astype(w3.dtype), w3[...], preferred_element_type=jnp.float32) + b3[...]

    q1 = head(w1s1_ref, w1a1_ref, b11_ref, w21_ref, b21_ref, w31_ref, b31_ref)
    q2 = head(w1s2_ref, w1a2_ref, b12_ref, w22_ref, b22_ref, w32_ref, b32_ref)
    out_ref[...] = jnp.concatenate([q1, q2], axis=1).astype(out_ref.dtype)   # [TB, 2]


def fuse_critic_params(params, state_dims, compute_dtype=jnp.bfloat16):
    """Pre-fuse the twin-head Linear weights for the kernel.

    Call ONCE per parameter update and reuse across forward calls (re-fusing inside the
    forward would re-materialize all weights in HBM every call).  Weights are cast to
    `compute_dtype` (bf16 by default) for the MXU; biases stay f32 (kernel accumulates,
    adds bias and applies ReLU in f32).
    """
    S = state_dims
    H = params["w12"].shape[0]
    cd, f32 = compute_dtype, jnp.float32
    if 2 * H <= _LANES:
        # Twin heads fused: wide layer-1, block-diagonal layers 2/3 (zeros are free while
        # 2H fits in one 128-lane vreg).
        w11, w21 = params["w11"], params["w21"]                              # [S+A, H]
        z_hh = jnp.zeros_like(params["w12"])
        z_h1 = jnp.zeros_like(params["w13"])
        return dict(
            mode="fused", dtype=cd,
            w1s=jnp.concatenate([w11[:S], w21[:S]], axis=1).astype(cd),      # [S, 2H]
            w1a=jnp.concatenate([w11[S:], w21[S:]], axis=1).astype(cd),      # [A, 2H]
            b1=jnp.concatenate([params["b11"], params["b21"]], axis=1).astype(f32),
            w2=jnp.concatenate(
                [jnp.concatenate([params["w12"], z_hh], axis=1),
                 jnp.concatenate([z_hh, params["w22"]], axis=1)], axis=0).astype(cd),
            b2=jnp.concatenate([params["b12"], params["b22"]], axis=1).astype(f32),
            w3=jnp.concatenate(
                [jnp.concatenate([params["w13"], z_h1], axis=1),
                 jnp.concatenate([z_h1, params["w23"]], axis=1)], axis=0).astype(cd),
            b3=jnp.concatenate([params["b13"], params["b23"]], axis=1).astype(f32),
        )
    # Large hidden size: keep heads separate (no block-diagonal zero padding).
    out = dict(mode="perhead", dtype=cd)
    for h, tag in ((1, "h1"), (2, "h2")):
        w1 = params[f"w{h}1"]
        out[f"{tag}_w1s"] = w1[:S].astype(cd)
        out[f"{tag}_w1a"] = w1[S:].astype(cd)
        out[f"{tag}_b1"] = params[f"b{h}1"].astype(f32)
        out[f"{tag}_w2"] = params[f"w{h}2"].astype(cd)
        out[f"{tag}_b2"] = params[f"b{h}2"].astype(f32)
        out[f"{tag}_w3"] = params[f"w{h}3"].astype(cd)
        out[f"{tag}_b3"] = params[f"b{h}3"].astype(f32)
    return out


def _choose_tb(B, block_b):
    """Batch tile: 16-row aligned (bf16 sublane packing), <= block_b, never above B, and
    capped at ~B/2 so the 'parallel' grid axis has >=2 steps for v7x's two TensorCores."""
    if B < 16:
        return B                                  # single block equal to the full batch dim
    block_b = max(16, (block_b // 16) * 16)
    return min(block_b, max(16, (B // 2 // 16) * 16))


def critic_forward(states, actions, fused, *, block_b=2048):
    """forward(states, actions) -> (q1, q2); `fused` comes from fuse_critic_params."""
    B, S = states.shape
    A = actions.shape[1]
    cd = fused["dtype"]
    states = states.astype(cd)
    actions = actions.astype(cd)

    TB = _choose_tb(B, block_b)
    grid = pl.cdiv(B, TB)        # partial last block is masked by Pallas (no jnp.pad copies)

    if fused["mode"] == "fused":
        kernel = _critic_kernel_fused
        wkeys = ("w1s", "w1a", "b1", "w2", "b2", "w3", "b3")
        H2 = fused["b1"].shape[1]                                            # 2H
        flops = 2 * B * ((S + A) * H2 + H2 * H2 + 2 * H2)
    else:
        kernel = _critic_kernel_perhead
        wkeys = ("h1_w1s", "h1_w1a", "h1_b1", "h1_w2", "h1_b2", "h1_w3", "h1_b3",
                 "h2_w1s", "h2_w1a", "h2_b1", "h2_w2", "h2_b2", "h2_w3", "h2_b3")
        H = fused["h1_b1"].shape[1]
        flops = 4 * B * ((S + A) * H + H * H + H)
    weights = [fused[k] for k in wkeys]

    batch_spec = lambda feat: pl.BlockSpec((TB, feat), lambda i: (i, 0))
    # Constant index_map -> weight/bias blocks are DMA'd once and stay VMEM-resident across
    # the grid (still double-buffered by BlockSpec; tiny here, and the per-head path avoids
    # the 4*H^2 block-diagonal footprint for large H on v7x's 64 MiB VMEM).
    resident = lambda w: pl.BlockSpec(w.shape, lambda i: (0, 0))

    in_bytes = B * (S + A) * jnp.dtype(cd).itemsize
    w_bytes = sum(int(w.size) * w.dtype.itemsize for w in weights)
    cost = pl.CostEstimate(flops=int(flops), transcendentals=0,
                           bytes_accessed=int(in_bytes + w_bytes + B * 2 * 4))

    out = pl.pallas_call(
        kernel,
        out_shape=jax.ShapeDtypeStruct((B, 2), jnp.float32),
        grid=(grid,),
        in_specs=[batch_spec(S), batch_spec(A)] + [resident(w) for w in weights],
        out_specs=pl.BlockSpec((TB, 2), lambda i: (i, 0)),
        compiler_params=pltpu.CompilerParams(
            dimension_semantics=("parallel",),
            # v5e's default scoped-VMEM limit is only 16 MiB; be explicit so large batch
            # tiles (lane-padded input buffers + f32 intermediates) fit without surprises.
            vmem_limit_bytes=64 * 1024 * 1024,
        ),
        cost_estimate=cost,
    )(states, actions, *weights)

    # Packed (q1 | q2) output: single store per tile.  Output bytes are tiny, so we keep
    # the [B, 2] layout rather than paying an XLU transpose for a lane-dense (2, B) store.
    return out[:, 0:1], out[:, 1:2]


def init_params(key, state_dims, action_dims, hidden_dims):
    """Deterministic nn.Linear-style init; weights stored as [in, out], biases as [1, out]."""
    in_dim = state_dims + action_dims
    layers = [("11", in_dim, hidden_dims), ("12", hidden_dims, hidden_dims), ("13", hidden_dims, 1),
              ("21", in_dim, hidden_dims), ("22", hidden_dims, hidden_dims), ("23", hidden_dims, 1)]
    params = {}
    for name, fan_in, fan_out in layers:
        key, kw, kb = jax.random.split(key, 3)
        bound = 1.0 / jnp.sqrt(fan_in)
        params["w" + name] = jax.random.uniform(kw, (fan_in, fan_out), jnp.float32, -bound, bound)
        params["b" + name] = jax.random.uniform(kb, (1, fan_out), jnp.float32, -bound, bound)
    return params


def critic_reference(states, actions, params):
    """Pure-JAX f32 reference (mirrors the PyTorch forward) for correctness checks."""
    hi = jax.lax.Precision.HIGHEST
    dot = lambda a, b: jnp.dot(a, b, precision=hi)
    sa = jnp.concatenate([states, actions], axis=1)
    x = jax.nn.relu(dot(sa, params["w11"]) + params["b11"])
    x = jax.nn.relu(dot(x, params["w12"]) + params["b12"])
    x = dot(x, params["w13"]) + params["b13"]
    y = jax.nn.relu(dot(sa, params["w21"]) + params["b21"])
    y = jax.nn.relu(dot(y, params["w22"]) + params["b22"])
    y = dot(y, params["w23"]) + params["b23"]
    return x, y


if __name__ == "__main__":
    key = jax.random.PRNGKey(0)

    # Case 1: small critic (fused twin-head path, single tile) — exact f32 and bf16 compute.
    B, S, A, H = 8, 12, 4, 32
    key, ks, ka, kp = jax.random.split(key, 4)
    states = jax.random.normal(ks, (B, S), jnp.float32)
    actions = jax.random.normal(ka, (B, A), jnp.float32)
    params = init_params(kp, S, A, H)
    r1, r2 = critic_reference(states, actions, params)

    fused_f32 = fuse_critic_params(params, S, compute_dtype=jnp.float32)
    q1, q2 = critic_forward(states, actions, fused_f32)
    jax.block_until_ready((q1, q2))
    assert q1.shape == (B, 1) and q2.shape == (B, 1)
    assert jnp.allclose(q1, r1, atol=2e-4, rtol=2e-4), "f32 q1 mismatch"
    assert jnp.allclose(q2, r2, atol=2e-4, rtol=2e-4), "f32 q2 mismatch"

    fused_bf16 = fuse_critic_params(params, S)          # default bf16 streaming
    q1b, q2b = critic_forward(states, actions, fused_bf16)
    jax.block_until_ready((q1b, q2b))
    assert jnp.allclose(q1b, r1, atol=5e-2, rtol=5e-2), "bf16 q1 mismatch"
    assert jnp.allclose(q2b, r2, atol=5e-2, rtol=5e-2), "bf16 q2 mismatch"

    # Case 2: larger hidden size (per-head kernel), batch not a tile multiple
    # (multi-step "parallel" grid + masked partial last block, no jnp.pad).
    B2, H2 = 40, 128
    key, ks2, ka2, kp2 = jax.random.split(key, 4)
    states2 = jax.random.normal(ks2, (B2, S), jnp.float32)
    actions2 = jax.random.normal(ka2, (B2, A), jnp.float32)
    params2 = init_params(kp2, S, A, H2)
    r1c, r2c = critic_reference(states2, actions2, params2)
    fused2 = fuse_critic_params(params2, S)
    q1c, q2c = critic_forward(states2, actions2, fused2)
    jax.block_until_ready((q1c, q2c))
    assert q1c.shape == (B2, 1) and q2c.shape == (B2, 1)
    assert jnp.allclose(q1c, r1c, atol=5e-2, rtol=5e-2), "per-head q1 mismatch"
    assert jnp.allclose(q2c, r2c, atol=5e-2, rtol=5e-2), "per-head q2 mismatch"

    print("KERNEL_OK")
</pallas_src>

<mosaic_0001>
module attributes {stable_mosaic.version = 11 : i64} {
  func.func @_critic_kernel_fused(%arg0: i32, %arg1: memref<8x12xf32, #tpu.memory_space<vmem>>, %arg2: memref<8x4xf32, #tpu.memory_space<vmem>>, %arg3: memref<12x64xf32, #tpu.memory_space<vmem>>, %arg4: memref<4x64xf32, #tpu.memory_space<vmem>>, %arg5: memref<1x64xf32, #tpu.memory_space<vmem>>, %arg6: memref<64x64xf32, #tpu.memory_space<vmem>>, %arg7: memref<1x64xf32, #tpu.memory_space<vmem>>, %arg8: memref<64x2xf32, #tpu.memory_space<vmem>>, %arg9: memref<1x2xf32, #tpu.memory_space<vmem>>, %arg10: memref<8x2xf32, #tpu.memory_space<vmem>>) attributes {dimension_semantics = [#tpu.dimension_semantics<parallel>], iteration_bounds = array<i64: 1>, scalar_prefetch = 0 : i64, scratch_operands = 0 : i64, tpu.core_type = #tpu.core_type<tc>, window_params = [{transform_indices = @transform_0, window_bounds = array<i64: 8, 12>}, {transform_indices = @transform_1, window_bounds = array<i64: 8, 4>}, {pipeline_mode = #tpu.pipeline_mode<synchronous>, transform_indices = @transform_2, window_bounds = array<i64: 12, 64>}, {pipeline_mode = #tpu.pipeline_mode<synchronous>, transform_indices = @transform_3, window_bounds = array<i64: 4, 64>}, {pipeline_mode = #tpu.pipeline_mode<synchronous>, transform_indices = @transform_4, window_bounds = array<i64: 1, 64>}, {pipeline_mode = #tpu.pipeline_mode<synchronous>, transform_indices = @transform_5, window_bounds = array<i64: 64, 64>}, {pipeline_mode = #tpu.pipeline_mode<synchronous>, transform_indices = @transform_6, window_bounds = array<i64: 1, 64>}, {pipeline_mode = #tpu.pipeline_mode<synchronous>, transform_indices = @transform_7, window_bounds = array<i64: 64, 2>}, {pipeline_mode = #tpu.pipeline_mode<synchronous>, transform_indices = @transform_8, window_bounds = array<i64: 1, 2>}, {transform_indices = @transform_9, window_bounds = array<i64: 8, 2>}]} {
    %c0 = arith.constant 0 : index
    %c0_0 = arith.constant 0 : index
    %0 = vector.load %arg1[%c0, %c0_0] : memref<8x12xf32, #tpu.memory_space<vmem>>, vector<8x12xf32>
    %c0_1 = arith.constant 0 : index
    %c0_2 = arith.constant 0 : index
    %1 = vector.load %arg3[%c0_1, %c0_2] : memref<12x64xf32, #tpu.memory_space<vmem>>, vector<12x64xf32>
    %cst = arith.constant dense<0.000000e+00> : vector<8x64xf32>
    %2 = tpu.matmul %0, %1, %cst {dimension_numbers = #tpu.dot_dimension_numbers<[1], [0], [0], [1], [0, 0, 1, 1], [], []>} : vector<8x12xf32>, vector<12x64xf32>, vector<8x64xf32> -> vector<8x64xf32>
    %c0_3 = arith.constant 0 : index
    %c0_4 = arith.constant 0 : index
    %3 = vector.load %arg2[%c0_3, %c0_4] : memref<8x4xf32, #tpu.memory_space<vmem>>, vector<8x4xf32>
    %c0_5 = arith.constant 0 : index
    %c0_6 = arith.constant 0 : index
    %4 = vector.load %arg4[%c0_5, %c0_6] : memref<4x64xf32, #tpu.memory_space<vmem>>, vector<4x64xf32>
    %cst_7 = arith.constant dense<0.000000e+00> : vector<8x64xf32>
    %5 = tpu.matmul %3, %4, %cst_7 {dimension_numbers = #tpu.dot_dimension_numbers<[1], [0], [0], [1], [0, 0, 1, 1], [], []>} : vector<8x4xf32>, vector<4x64xf32>, vector<8x64xf32> -> vector<8x64xf32>
    %6 = arith.addf %2, %5 : vector<8x64xf32>
    %c0_8 = arith.constant 0 : index
    %c0_9 = arith.constant 0 : index
    %7 = vector.load %arg5[%c0_8, %c0_9] : memref<1x64xf32, #tpu.memory_space<vmem>>, vector<1x64xf32>
    %8 = vector.broadcast %7 : vector<1x64xf32> to vector<8x64xf32>
    %9 = arith.addf %6, %8 : vector<8x64xf32>
    %cst_10 = arith.constant 0.000000e+00 : f32
    %10 = vector.broadcast %cst_10 : f32 to vector<8x64xf32>
    %11 = arith.maximumf %9, %10 : vector<8x64xf32>
    %c0_11 = arith.constant 0 : index
    %c0_12 = arith.constant 0 : index
    %12 = vector.load %arg6[%c0_11, %c0_12] : memref<64x64xf32, #tpu.memory_space<vmem>>, vector<64x64xf32>
    %cst_13 = arith.constant dense<0.000000e+00> : vector<8x64xf32>
    %13 = tpu.matmul %11, %12, %cst_13 {dimension_numbers = #tpu.dot_dimension_numbers<[1], [0], [0], [1], [0, 0, 1, 1], [], []>} : vector<8x64xf32>, vector<64x64xf32>, vector<8x64xf32> -> vector<8x64xf32>
    %c0_14 = arith.constant 0 : index
    %c0_15 = arith.constant 0 : index
    %14 = vector.load %arg7[%c0_14, %c0_15] : memref<1x64xf32, #tpu.memory_space<vmem>>, vector<1x64xf32>
    %15 = vector.broadcast %14 : vector<1x64xf32> to vector<8x64xf32>
    %16 = arith.addf %13, %15 : vector<8x64xf32>
    %cst_16 = arith.constant 0.000000e+00 : f32
    %17 = vector.broadcast %cst_16 : f32 to vector<8x64xf32>
    %18 = arith.maximumf %16, %17 : vector<8x64xf32>
    %c0_17 = arith.constant 0 : index
    %c0_18 = arith.constant 0 : index
    %19 = vector.load %arg8[%c0_17, %c0_18] : memref<64x2xf32, #tpu.memory_space<vmem>>, vector<64x2xf32>
    %cst_19 = arith.constant dense<0.000000e+00> : vector<8x2xf32>
    %20 = tpu.matmul %18, %19, %cst_19 {dimension_numbers = #tpu.dot_dimension_numbers<[1], [0], [0], [1], [0, 0, 1, 1], [], []>} : vector<8x64xf32>, vector<64x2xf32>, vector<8x2xf32> -> vector<8x2xf32>
    %c0_20 = arith.constant 0 : index
    %c0_21 = arith.constant 0 : index
    %21 = vector.load %arg9[%c0_20, %c0_21] : memref<1x2xf32, #tpu.memory_space<vmem>>, vector<1x2xf32>
    %22 = vector.broadcast %21 : vector<1x2xf32> to vector<8x2xf32>
    %23 = arith.addf %20, %22 : vector<8x2xf32>
    %c0_22 = arith.constant 0 : index
    %c0_23 = arith.constant 0 : index
    %24 = vector.load %arg10[%c0_22, %c0_23] : memref<8x2xf32, #tpu.memory_space<vmem>>, vector<8x2xf32>
    tpu.vector_store %arg10[%c0_22, %c0_23], %23 {strides = array<i32>} : memref<8x2xf32, #tpu.memory_space<vmem>>, vector<8x2xf32>,
    return
  }
  func.func @transform_0(%arg0: i32) -> (i32, i32) {
    %c0_i32 = arith.constant 0 : i32
    %c0_i32_0 = arith.constant 0 : i32
    return %arg0, %c0_i32 : i32, i32
  }
  func.func @transform_1(%arg0: i32) -> (i32, i32) {
    %c0_i32 = arith.constant 0 : i32
    %c0_i32_0 = arith.constant 0 : i32
    return %arg0, %c0_i32 : i32, i32
  }
  func.func @transform_2(%arg0: i32) -> (i32, i32) {
    %c0_i32 = arith.constant 0 : i32
    %c0_i32_0 = arith.constant 0 : i32
    %c0_i32_1 = arith.constant 0 : i32
    return %c0_i32, %c0_i32_0 : i32, i32
  }
  func.func @transform_3(%arg0: i32) -> (i32, i32) {
    %c0_i32 = arith.constant 0 : i32
    %c0_i32_0 = arith.constant 0 : i32
    %c0_i32_1 = arith.constant 0 : i32
    return %c0_i32, %c0_i32_0 : i32, i32
  }
  func.func @transform_4(%arg0: i32) -> (i32, i32) {
    %c0_i32 = arith.constant 0 : i32
    %c0_i32_0 = arith.constant 0 : i32
    %c0_i32_1 = arith.constant 0 : i32
    return %c0_i32, %c0_i32_0 : i32, i32
  }
  func.func @transform_5(%arg0: i32) -> (i32, i32) {
    %c0_i32 = arith.constant 0 : i32
    %c0_i32_0 = arith.constant 0 : i32
    %c0_i32_1 = arith.constant 0 : i32
    return %c0_i32, %c0_i32_0 : i32, i32
  }
  func.func @transform_6(%arg0: i32) -> (i32, i32) {
    %c0_i32 = arith.constant 0 : i32
    %c0_i32_0 = arith.constant 0 : i32
    %c0_i32_1 = arith.constant 0 : i32
    return %c0_i32, %c0_i32_0 : i32, i32
  }
  func.func @transform_7(%arg0: i32) -> (i32, i32) {
    %c0_i32 = arith.constant 0 : i32
    %c0_i32_0 = arith.constant 0 : i32
    %c0_i32_1 = arith.constant 0 : i32
    return %c0_i32, %c0_i32_0 : i32, i32
  }
  func.func @transform_8(%arg0: i32) -> (i32, i32) {
    %c0_i32 = arith.constant 0 : i32
    %c0_i32_0 = arith.constant 0 : i32
    %c0_i32_1 = arith.constant 0 : i32
    return %c0_i32, %c0_i32_0 : i32, i32
  }
  func.func @transform_9(%arg0: i32) -> (i32, i32) {
    %c0_i32 = arith.constant 0 : i32
    %c0_i32_0 = arith.constant 0 : i32
    return %arg0, %c0_i32 : i32, i32
  }
}

</mosaic_0001>

<llo_original>
// kernel: tpu_custom_call.1
$region0: #{tpu_custom_call.1}
  #allocation0 [shape = 'u32[]', space=smem, size = 0x4, offset = 0x4, fixed_abs, tag = 'smem constant byte address 0x4 - core index']
  #allocation1 [shape = 'u32[144,128]{1,0:T(1,128)}', space=vmem, size = 0x12000, scoped, tag = 'internal scratch']
  %s0 = inlined_call_operand.hbm [shape: f32[8,12], index: 0, kind: input, shape index: {}]
  %s1 = inlined_call_operand.hbm [shape: f32[8,4], index: 1, kind: input, shape index: {}]
  %s2 = inlined_call_operand.hbm [shape: f32[12,64], index: 2, kind: input, shape index: {}]
  %s3 = inlined_call_operand.hbm [shape: f32[4,64], index: 3, kind: input, shape index: {}]
  %s4 = inlined_call_operand.hbm [shape: f32[1,64], index: 4, kind: input, shape index: {}]
  %s5 = inlined_call_operand.hbm [shape: f32[64,64], index: 5, kind: input, shape index: {}]
  %s6 = inlined_call_operand.hbm [shape: f32[1,64], index: 6, kind: input, shape index: {}]
  %s7 = inlined_call_operand.hbm [shape: f32[64,2], index: 7, kind: input, shape index: {}]
  %s8 = inlined_call_operand.hbm [shape: f32[1,2], index: 8, kind: input, shape index: {}]
  %s9 = inlined_call_operand.hbm [shape: f32[8,2], index: 9, kind: output, shape index: {}]
  %s10 = sld [smem:[#allocation0]]
  $region82: #{tpu_custom_call.1} parent=0
    _
  %s12 = ssub.s32 1, %s10
  %s13 = scalar_select 0, %s12, %s10
  $region1: #{tpu_custom_call.1} parent=0
    #allocation2 [shape = 'u8[4096]{0}', space=vmem, size = 0x1000, scoped, tag = 'input window, operand 0, single buffered']
    #allocation3 [shape = 's32[1]{0}', space=sflag, size = 0x4, scoped, tag = 'scoped memory for tpu_custom_call.1']
    #allocation4 [shape = 's32[1]{0}', space=sflag, size = 0x4, scoped, tag = 'scoped memory for tpu_custom_call.1']
    #allocation5 [shape = 'u8[4096]{0}', space=vmem, size = 0x1000, scoped, tag = 'input window, operand 1, single buffered']
    #allocation6 [shape = 's32[1]{0}', space=sflag, size = 0x4, scoped, tag = 'scoped memory for tpu_custom_call.1']
    #allocation7 [shape = 'u8[8192]{0}', space=vmem, size = 0x2000, scoped, tag = 'input window, operand 2, single buffered']
    #allocation8 [shape = 'u8[2048]{0}', space=vmem, size = 0x800, scoped, tag = 'input window, operand 3, single buffered']
    #allocation9 [shape = 's32[1]{0}', space=sflag, size = 0x4, scoped, tag = 'scoped memory for tpu_custom_call.1']
    #allocation10 [shape = 'u8[512]{0}', space=vmem, size = 0x400, scoped, tag = 'input window, operand 4, single buffered']
    #allocation11 [shape = 'u8[32768]{0}', space=vmem, size = 0x8000, scoped, tag = 'input window, operand 5, single buffered']
    #allocation12 [shape = 's32[1]{0}', space=sflag, size = 0x4, scoped, tag = 'scoped memory for tpu_custom_call.1']
    #allocation13 [shape = 'u8[512]{0}', space=vmem, size = 0x400, scoped, tag = 'input window, operand 6, single buffered']
    #allocation14 [shape = 'u8[32768]{0}', space=vmem, size = 0x8000, scoped, tag = 'input window, operand 7, single buffered']
    #allocation15 [shape = 's32[1]{0}', space=sflag, size = 0x4, scoped, tag = 'scoped memory for tpu_custom_call.1']
    #allocation16 [shape = 'u8[512]{0}', space=vmem, size = 0x400, scoped, tag = 'input window, operand 8, single buffered']
    #allocation17 [shape = 'u8[4096]{0}', space=vmem, size = 0x1000, scoped, tag = 'output window, operand 0, single buffered']
    %14 = vsyncpa [#allocation3], 0
    %15 = vsyncpa [#allocation6], 0
    %16 = vsyncpa [#allocation9], 0
    %17 = vsyncpa [#allocation12], 0
    %18 = vsyncpa [#allocation15], 0
    %19 = vsyncpa [#allocation4], 0
    // Predicated region
    $region2: #{tpu_custom_call.1} parent=1 // pred_check
      _
    $region3: #{tpu_custom_call.1} parent=1 // pred_check_branch
      %21 = sbr.rel (0) target = $region5
    $region4: #{tpu_custom_call.1} parent=1 // pred_region
      %s23 = ssub.s32 128, 128
      %24 = vsyncadd [#allocation3], %s23
      %s26 = sshll.u32 [#allocation2], 4
      %s27 = int_to_ptr.vmem [resolvable:$true] %s26
      %29 = dma.hbm_to_vmem [thread:$0]  %s0, 128, %s27, [#allocation3]
    $region5: #{tpu_custom_call.1} parent=1 // pred_fallthru
      _
    // Predicated region
    $region6: #{tpu_custom_call.1} parent=1 // pred_check
      _
    $region7: #{tpu_custom_call.1} parent=1 // pred_check_branch
      %31 = sbr.rel (0) target = $region9
    $region8: #{tpu_custom_call.1} parent=1 // pred_region
      %s33 = ssub.s32 128, 128
      %34 = vsyncadd [#allocation6], %s33
      %s36 = sshll.u32 [#allocation5], 4
      %s37 = int_to_ptr.vmem [resolvable:$true] %s36
      %39 = dma.hbm_to_vmem [thread:$0]  %s1, 128, %s37, [#allocation6]
    $region9: #{tpu_custom_call.1} parent=1 // pred_fallthru
      _
    // Predicated region
    $region10: #{tpu_custom_call.1} parent=1 // pred_check
      _
    $region11: #{tpu_custom_call.1} parent=1 // pred_check_branch
      %41 = sbr.rel (0) target = $region13
    $region12: #{tpu_custom_call.1} parent=1 // pred_region
      %s43 = ssub.s32 256, 256
      %44 = vsyncadd [#allocation6], %s43
      %s45 = sshll.u32 [#allocation7], 4
      %s46 = int_to_ptr.vmem [resolvable:$true] %s45
      %51 = dma.hbm_to_vmem [thread:$0]  %s2, 256, %s46, [#allocation6], 128, 128, 8
    $region13: #{tpu_custom_call.1} parent=1 // pred_fallthru
      _
    // Predicated region
    $region14: #{tpu_custom_call.1} parent=1 // pred_check
      _
    $region15: #{tpu_custom_call.1} parent=1 // pred_check_branch
      %53 = sbr.rel (0) target = $region17
    $region16: #{tpu_custom_call.1} parent=1 // pred_region
      %s55 = ssub.s32 64, 64
      %56 = vsyncadd [#allocation9], %s55
      %s58 = sshll.u32 [#allocation8], 4
      %s59 = int_to_ptr.vmem [resolvable:$true] %s58
      %61 = dma.hbm_to_vmem [thread:$0]  %s3, 64, %s59, [#allocation9]
    $region17: #{tpu_custom_call.1} parent=1 // pred_fallthru
      _
    // Predicated region
    $region18: #{tpu_custom_call.1} parent=1 // pred_check
      _
    $region19: #{tpu_custom_call.1} parent=1 // pred_check_branch
      %63 = sbr.rel (0) target = $region21
    $region20: #{tpu_custom_call.1} parent=1 // pred_region
      %s65 = ssub.s32 16, 16
      %66 = vsyncadd [#allocation9], %s65
      %s68 = sshll.u32 [#allocation10], 4
      %s69 = int_to_ptr.vmem [resolvable:$true] %s68
      %71 = dma.hbm_to_vmem [thread:$0]  %s4, 16, %s69, [#allocation9]
    $region21: #{tpu_custom_call.1} parent=1 // pred_fallthru
      _
    // Predicated region
    $region22: #{tpu_custom_call.1} parent=1 // pred_check
      _
    $region23: #{tpu_custom_call.1} parent=1 // pred_check_branch
      %73 = sbr.rel (0) target = $region25
    $region24: #{tpu_custom_call.1} parent=1 // pred_region
      %s75 = ssub.s32 1024, 1024
      %76 = vsyncadd [#allocation12], %s75
      %s77 = sshll.u32 [#allocation11], 4
      %s78 = int_to_ptr.vmem [resolvable:$true] %s77
      %83 = dma.hbm_to_vmem [thread:$0]  %s5, 1024, %s78, [#allocation12], 128, 128, 8
    $region25: #{tpu_custom_call.1} parent=1 // pred_fallthru
      _
    // Predicated region
    $region26: #{tpu_custom_call.1} parent=1 // pred_check
      _
    $region27: #{tpu_custom_call.1} parent=1 // pred_check_branch
      %85 = sbr.rel (0) target = $region29
    $region28: #{tpu_custom_call.1} parent=1 // pred_region
      %s87 = ssub.s32 16, 16
      %88 = vsyncadd [#allocation12], %s87
      %s90 = sshll.u32 [#allocation13], 4
      %s91 = int_to_ptr.vmem [resolvable:$true] %s90
      %93 = dma.hbm_to_vmem [thread:$0]  %s6, 16, %s91, [#allocation12]
    $region29: #{tpu_custom_call.1} parent=1 // pred_fallthru
      _
    // Predicated region
    $region30: #{tpu_custom_call.1} parent=1 // pred_check
      _
    $region31: #{tpu_custom_call.1} parent=1 // pred_check_branch
      %95 = sbr.rel (0) target = $region33
    $region32: #{tpu_custom_call.1} parent=1 // pred_region
      %s97 = ssub.s32 1024, 1024
      %98 = vsyncadd [#allocation15], %s97
      %s99 = sshll.u32 [#allocation14], 4
      %s100 = int_to_ptr.vmem [resolvable:$true] %s99
      %105 = dma.hbm_to_vmem [thread:$0]  %s7, 1024, %s100, [#allocation15], 128, 128, 8
    $region33: #{tpu_custom_call.1} parent=1 // pred_fallthru
      _
    // Predicated region
    $region34: #{tpu_custom_call.1} parent=1 // pred_check
      _
    $region35: #{tpu_custom_call.1} parent=1 // pred_check_branch
      %107 = sbr.rel (0) target = $region37
    $region36: #{tpu_custom_call.1} parent=1 // pred_region
      %s109 = ssub.s32 16, 16
      %110 = vsyncadd [#allocation15], %s109
      %s112 = sshll.u32 [#allocation16], 4
      %s113 = int_to_ptr.vmem [resolvable:$true] %s112
      %115 = dma.hbm_to_vmem [thread:$0]  %s8, 16, %s113, [#allocation15]
    $region37: #{tpu_custom_call.1} parent=1 // pred_fallthru
      _
    // Predicated region
    $region38: #{tpu_custom_call.1} parent=1 // pred_check
      _
    $region39: #{tpu_custom_call.1} parent=1 // pred_check_branch
      %117 = sbr.rel (0) target = $region41
    $region40: #{tpu_custom_call.1} parent=1 // pred_region
      %118 = dma.done [#allocation3], 128
    $region41: #{tpu_custom_call.1} parent=1 // pred_fallthru
      _
    // Predicated region
    $region42: #{tpu_custom_call.1} parent=1 // pred_check
      _
    $region43: #{tpu_custom_call.1} parent=1 // pred_check_branch
      %120 = sbr.rel (0) target = $region45
    $region44: #{tpu_custom_call.1} parent=1 // pred_region
      %121 = dma.done [#allocation6], 128
    $region45: #{tpu_custom_call.1} parent=1 // pred_fallthru
      _
    // Predicated region
    $region46: #{tpu_custom_call.1} parent=1 // pred_check
      _
    $region47: #{tpu_custom_call.1} parent=1 // pred_check_branch
      %123 = sbr.rel (0) target = $region49
    $region48: #{tpu_custom_call.1} parent=1 // pred_region
      %124 = dma.done [#allocation6], 256
    $region49: #{tpu_custom_call.1} parent=1 // pred_fallthru
      _
    // Predicated region
    $region50: #{tpu_custom_call.1} parent=1 // pred_check
      _
    $region51: #{tpu_custom_call.1} parent=1 // pred_check_branch
      %126 = sbr.rel (0) target = $region53
    $region52: #{tpu_custom_call.1} parent=1 // pred_region
      %127 = dma.done [#allocation9], 64
    $region53: #{tpu_custom_call.1} parent=1 // pred_fallthru
      _
    // Predicated region
    $region54: #{tpu_custom_call.1} parent=1 // pred_check
      _
    $region55: #{tpu_custom_call.1} parent=1 // pred_check_branch
      %129 = sbr.rel (0) target = $region57
    $region56: #{tpu_custom_call.1} parent=1 // pred_region
      %130 = dma.done [#allocation9], 16
    $region57: #{tpu_custom_call.1} parent=1 // pred_fallthru
      _
    // Predicated region
    $region58: #{tpu_custom_call.1} parent=1 // pred_check
      _
    $region59: #{tpu_custom_call.1} parent=1 // pred_check_branch
      %132 = sbr.rel (0) target = $region61
    $region60: #{tpu_custom_call.1} parent=1 // pred_region
      %133 = dma.done [#allocation12], 1024
    $region61: #{tpu_custom_call.1} parent=1 // pred_fallthru
      _
    // Predicated region
    $region62: #{tpu_custom_call.1} parent=1 // pred_check
      _
    $region63: #{tpu_custom_call.1} parent=1 // pred_check_branch
      %135 = sbr.rel (0) target = $region65
    $region64: #{tpu_custom_call.1} parent=1 // pred_region
      %136 = dma.done [#allocation12], 16
    $region65: #{tpu_custom_call.1} parent=1 // pred_fallthru
      _
    // Predicated region
    $region66: #{tpu_custom_call.1} parent=1 // pred_check
      _
    $region67: #{tpu_custom_call.1} parent=1 // pred_check_branch
      %138 = sbr.rel (0) target = $region69
    $region68: #{tpu_custom_call.1} parent=1 // pred_region
      %139 = dma.done [#allocation15], 1024
    $region69: #{tpu_custom_call.1} parent=1 // pred_fallthru
      _
    // Predicated region
    $region70: #{tpu_custom_call.1} parent=1 // pred_check
      _
    $region71: #{tpu_custom_call.1} parent=1 // pred_check_branch
      %141 = sbr.rel (0) target = $region73
    $region72: #{tpu_custom_call.1} parent=1 // pred_region
      %142 = dma.done [#allocation15], 16
    $region73: #{tpu_custom_call.1} parent=1 // pred_fallthru
      _
    %v143 = vld [vmem:[#allocation2] sm:$0xff]
    %v144 = vld [vmem:[#allocation7] sm:$0xff]
    %v145 = vld [vmem:[#allocation7 + $0x8] sm:$0xf]
    %v146 = vld [vmem:[#allocation5] sm:$0xff]
    %v147 = vld [vmem:[#allocation8] sm:$0xf]
    %vm148 = vcmask 31744
    %v150 = vsel %vm148, %v146, 0
    %vm152 = vcmask 1043456
    %v154 = vsel %vm152, %v147, 0
    %156 = vmatprep.subr.mxu0 0.0
    %157 = vmatpush1.msra.mxu0 %v154
    %158 = vmatprep.subr.mxu0 0.0
    %159 = vmatpush1.msra.mxu0 0.0
    %160 = vmatprep.subr.mxu0 0.0
    %161 = vmatpush1.msra.mxu0 0.0
    %162 = vmatprep.subr.mxu0 0.0
    %163 = vmatpush1.msra.mxu0 0.0
    %164 = vmatprep.subr.mxu0 0.0
    %165 = vmatpush1.msra.mxu0 0.0
    %166 = vmatprep.subr.mxu0 0.0
    %167 = vmatpush1.msra.mxu0 0.0
    %168 = vmatprep.subr.mxu0 0.0
    %169 = vmatpush1.msra.mxu0 0.0
    %170 = vmatprep.subr.mxu0 0.0
    %171 = vmatpush1.msra.mxu0 0.0
    %172 = vmatprep.subr.mxu0 0.0
    %173 = vmatpush1.msra.mxu0 0.0
    %174 = vmatprep.subr.mxu0 0.0
    %175 = vmatpush1.msra.mxu0 0.0
    %176 = vmatprep.subr.mxu0 0.0
    %177 = vmatpush1.msra.mxu0 0.0
    %178 = vmatprep.subr.mxu0 0.0
    %179 = vmatpush1.msra.mxu0 0.0
    %180 = vmatprep.subr.mxu0 0.0
    %181 = vmatpush1.msra.mxu0 0.0
    %182 = vmatprep.subr.mxu0 0.0
    %183 = vmatpush1.msra.mxu0 0.0
    %184 = vmatprep.subr.mxu0 0.0
    %185 = vmatpush1.msra.mxu0 0.0
    %186 = vmatprep.subr.mxu0 0.0
    %187 = vmatpush1.msra.mxu0 0.0
    %188 = vmatprep.subr.mxu0 0.0
    %189 = vmatpush1.msra.mxu0 0.0
    %190 = vmatprep.subr.mxu0 0.0
    %191 = vmatpush1.msra.mxu0 0.0
    %192 = vmatprep.subr.mxu0 0.0
    %193 = vmatpush1.msra.mxu0 0.0
    %194 = vmatprep.subr.mxu0 0.0
    %195 = vmatpush1.msra.mxu0 0.0
    %196 = vmatprep.subr.mxu0 0.0
    %197 = vmatpush1.msra.mxu0 0.0
    %198 = vmatprep.subr.mxu0 0.0
    %199 = vmatpush1.msra.mxu0 0.0
    %200 = vmatprep.subr.mxu0 0.0
    %201 = vmatpush1.msra.mxu0 0.0
    %202 = vmatprep.subr.mxu0 0.0
    %203 = vmatpush1.msra.mxu0 0.0
    %204 = vmatprep.subr.mxu0 0.0
    %205 = vmatpush1.msra.mxu0 0.0
    %206 = vmatprep.subr.mxu0 0.0
    %207 = vmatpush1.msra.mxu0 0.0
    %208 = vmatprep.subr.mxu0 0.0
    %209 = vmatpush1.msra.mxu0 0.0
    %210 = vmatprep.subr.mxu0 0.0
    %211 = vmatpush1.msra.mxu0 0.0
    %212 = vmatprep.subr.mxu0 0.0
    %213 = vmatpush1.msra.mxu0 0.0
    %214 = vmatprep.subr.mxu0 0.0
    %215 = vmatpush1.msra.mxu0 0.0
    %216 = vmatprep.subr.mxu0 0.0
    %217 = vmatpush1.msra.mxu0 0.0
    %218 = vmatprep.subr.mxu0 0.0
    %219 = vmatpush1.msra.mxu0 0.0
    %220 = vmatprep.mubr.f32.mxu0 0.0
    %221 = vmatmul.mubr.f32.gmra.mrb[0].mxu0 %v150
    %v222 = vpop.f32.mrb[0].mxu0
    %v223 = vadd.f32 0.0, %v222
    %v224 = vpop.f32.mrb[0].mxu0
    %225 = vdwg.mxu0
    %vm226 = vcmask 97280
    %v228 = vsel %vm226, %v143, 0
    %v231 = vsel %vm152, %v145, 0
    %233 = vmatprep.subr.mxu0 0.0
    %234 = vmatpush1.msra.mxu0 %v144
    %235 = vmatprep.subr.mxu0 0.0
    %236 = vmatpush1.msra.mxu0 %v231
    %237 = vmatprep.subr.mxu0 0.0
    %238 = vmatpush1.msra.mxu0 0.0
    %239 = vmatprep.subr.mxu0 0.0
    %240 = vmatpush1.msra.mxu0 0.0
    %241 = vmatprep.subr.mxu0 0.0
    %242 = vmatpush1.msra.mxu0 0.0
    %243 = vmatprep.subr.mxu0 0.0
    %244 = vmatpush1.msra.mxu0 0.0
    %245 = vmatprep.subr.mxu0 0.0
    %246 = vmatpush1.msra.mxu0 0.0
    %247 = vmatprep.subr.mxu0 0.0
    %248 = vmatpush1.msra.mxu0 0.0
    %249 = vmatprep.subr.mxu0 0.0
    %250 = vmatpush1.msra.mxu0 0.0
    %251 = vmatprep.subr.mxu0 0.0
    %252 = vmatpush1.msra.mxu0 0.0
    %253 = vmatprep.subr.mxu0 0.0
    %254 = vmatpush1.msra.mxu0 0.0
    %255 = vmatprep.subr.mxu0 0.0
    %256 = vmatpush1.msra.mxu0 0.0
    %257 = vmatprep.subr.mxu0 0.0
    %258 = vmatpush1.msra.mxu0 0.0
    %259 = vmatprep.subr.mxu0 0.0
    %260 = vmatpush1.msra.mxu0 0.0
    %261 = vmatprep.subr.mxu0 0.0
    %262 = vmatpush1.msra.mxu0 0.0
    %263 = vmatprep.subr.mxu0 0.0
    %264 = vmatpush1.msra.mxu0 0.0
    %265 = vmatprep.subr.mxu0 0.0
    %266 = vmatpush1.msra.mxu0 0.0
    %267 = vmatprep.subr.mxu0 0.0
    %268 = vmatpush1.msra.mxu0 0.0
    %269 = vmatprep.subr.mxu0 0.0
    %270 = vmatpush1.msra.mxu0 0.0
    %271 = vmatprep.subr.mxu0 0.0
    %272 = vmatpush1.msra.mxu0 0.0
    %273 = vmatprep.subr.mxu0 0.0
    %274 = vmatpush1.msra.mxu0 0.0
    %275 = vmatprep.subr.mxu0 0.0
    %276 = vmatpush1.msra.mxu0 0.0
    %277 = vmatprep.subr.mxu0 0.0
    %278 = vmatpush1.msra.mxu0 0.0
    %279 = vmatprep.subr.mxu0 0.0
    %280 = vmatpush1.msra.mxu0 0.0
    %281 = vmatprep.subr.mxu0 0.0
    %282 = vmatpush1.msra.mxu0 0.0
    %283 = vmatprep.subr.mxu0 0.0
    %284 = vmatpush1.msra.mxu0 0.0
    %285 = vmatprep.subr.mxu0 0.0
    %286 = vmatpush1.msra.mxu0 0.0
    %287 = vmatprep.subr.mxu0 0.0
    %288 = vmatpush1.msra.mxu0 0.0
    %289 = vmatprep.subr.mxu0 0.0
    %290 = vmatpush1.msra.mxu0 0.0
    %291 = vmatprep.subr.mxu0 0.0
    %292 = vmatpush1.msra.mxu0 0.0
    %293 = vmatprep.subr.mxu0 0.0
    %294 = vmatpush1.msra.mxu0 0.0
    %295 = vmatprep.subr.mxu0 0.0
    %296 = vmatpush1.msra.mxu0 0.0
    %297 = vmatprep.mubr.f32.mxu0 0.0
    %298 = vmatmul.mubr.f32.gmra.mrb[0].mxu0 %v228
    %v299 = vpop.f32.mrb[0].mxu0
    %v300 = vadd.f32 %v223, %v299
    %v301 = vpop.f32.mrb[0].mxu0
    %302 = vdwg.mxu0
    %v303 = vld [vmem:[#allocation10] sm:$0x1]
    %v305 = vlaneseq
    %v306 = vshrl.u32 %v305, 7
    %v307 = vsub.s32 0, %v306
    %v308 = vrot.slane %v303, %v307
    %v310 = vadd.f32 %v300, %v308
    %v311 = vmax.f32 %v310, 0.0
    %v312 = vld [vmem:[#allocation11] sm:$0xff]
    %v313 = vld [vmem:[#allocation11 + $0x8] sm:$0xff]
    %v314 = vld [vmem:[#allocation11 + $0x10] sm:$0xff]
    %v315 = vld [vmem:[#allocation11 + $0x18] sm:$0xff]
    %v316 = vld [vmem:[#allocation11 + $0x20] sm:$0xff]
    %v317 = vld [vmem:[#allocation11 + $0x28] sm:$0xff]
    %v318 = vld [vmem:[#allocation11 + $0x30] sm:$0xff]
    %v319 = vld [vmem:[#allocation11 + $0x38] sm:$0xff]
    %v320 = vld [vmem:[#allocation13] sm:$0x1]
    %v322 = vlaneseq
    %v323 = vshrl.u32 %v322, 7
    %v324 = vsub.s32 0, %v323
    %v325 = vrot.slane %v320, %v324
    %vm327 = vcmask 523264
    %v329 = vsel %vm327, %v311, 0
    %331 = vmatprep.subr.mxu0 0.0
    %332 = vmatpush1.msra.mxu0 %v312
    %333 = vmatprep.subr.mxu0 0.0
    %334 = vmatpush1.msra.mxu0 %v313
    %335 = vmatprep.subr.mxu0 0.0
    %336 = vmatpush1.msra.mxu0 %v314
    %337 = vmatprep.subr.mxu0 0.0
    %338 = vmatpush1.msra.mxu0 %v315
    %339 = vmatprep.subr.mxu0 0.0
    %340 = vmatpush1.msra.mxu0 %v316
    %341 = vmatprep.subr.mxu0 0.0
    %342 = vmatpush1.msra.mxu0 %v317
    %343 = vmatprep.subr.mxu0 0.0
    %344 = vmatpush1.msra.mxu0 %v318
    %345 = vmatprep.subr.mxu0 0.0
    %346 = vmatpush1.msra.mxu0 %v319
    %347 = vmatprep.subr.mxu0 0.0
    %348 = vmatpush1.msra.mxu0 0.0
    %349 = vmatprep.subr.mxu0 0.0
    %350 = vmatpush1.msra.mxu0 0.0
    %351 = vmatprep.subr.mxu0 0.0
    %352 = vmatpush1.msra.mxu0 0.0
    %353 = vmatprep.subr.mxu0 0.0
    %354 = vmatpush1.msra.mxu0 0.0
    %355 = vmatprep.subr.mxu0 0.0
    %356 = vmatpush1.msra.mxu0 0.0
    %357 = vmatprep.subr.mxu0 0.0
    %358 = vmatpush1.msra.mxu0 0.0
    %359 = vmatprep.subr.mxu0 0.0
    %360 = vmatpush1.msra.mxu0 0.0
    %361 = vmatprep.subr.mxu0 0.0
    %362 = vmatpush1.msra.mxu0 0.0
    %363 = vmatprep.subr.mxu0 0.0
    %364 = vmatpush1.msra.mxu0 0.0
    %365 = vmatprep.subr.mxu0 0.0
    %366 = vmatpush1.msra.mxu0 0.0
    %367 = vmatprep.subr.mxu0 0.0
    %368 = vmatpush1.msra.mxu0 0.0
    %369 = vmatprep.subr.mxu0 0.0
    %370 = vmatpush1.msra.mxu0 0.0
    %371 = vmatprep.subr.mxu0 0.0
    %372 = vmatpush1.msra.mxu0 0.0
    %373 = vmatprep.subr.mxu0 0.0
    %374 = vmatpush1.msra.mxu0 0.0
    %375 = vmatprep.subr.mxu0 0.0
    %376 = vmatpush1.msra.mxu0 0.0
    %377 = vmatprep.subr.mxu0 0.0
    %378 = vmatpush1.msra.mxu0 0.0
    %379 = vmatprep.subr.mxu0 0.0
    %380 = vmatpush1.msra.mxu0 0.0
    %381 = vmatprep.subr.mxu0 0.0
    %382 = vmatpush1.msra.mxu0 0.0
    %383 = vmatprep.subr.mxu0 0.0
    %384 = vmatpush1.msra.mxu0 0.0
    %385 = vmatprep.subr.mxu0 0.0
    %386 = vmatpush1.msra.mxu0 0.0
    %387 = vmatprep.subr.mxu0 0.0
    %388 = vmatpush1.msra.mxu0 0.0
    %389 = vmatprep.subr.mxu0 0.0
    %390 = vmatpush1.msra.mxu0 0.0
    %391 = vmatprep.subr.mxu0 0.0
    %392 = vmatpush1.msra.mxu0 0.0
    %393 = vmatprep.subr.mxu0 0.0
    %394 = vmatpush1.msra.mxu0 0.0
    %395 = vmatprep.mubr.f32.mxu0 0.0
    %396 = vmatmul.mubr.f32.gmra.mrb[0].mxu0 %v329
    %v397 = vpop.f32.mrb[0].mxu0
    %v398 = vadd.f32 %v325, %v397
    %v399 = vpop.f32.mrb[0].mxu0
    %400 = vdwg.mxu0
    %v401 = vmax.f32 %v398, 0.0
    %v402 = vld [vmem:[#allocation14] sm:$0xff]
    %v403 = vld [vmem:[#allocation14 + $0x8] sm:$0xff]
    %v404 = vld [vmem:[#allocation14 + $0x10] sm:$0xff]
    %v405 = vld [vmem:[#allocation14 + $0x18] sm:$0xff]
    %v406 = vld [vmem:[#allocation14 + $0x20] sm:$0xff]
    %v407 = vld [vmem:[#allocation14 + $0x28] sm:$0xff]
    %v408 = vld [vmem:[#allocation14 + $0x30] sm:$0xff]
    %v409 = vld [vmem:[#allocation14 + $0x38] sm:$0xff]
    %v410 = vld [vmem:[#allocation16] sm:$0x1]
    %v412 = vlaneseq
    %v413 = vshrl.u32 %v412, 7
    %v414 = vsub.s32 0, %v413
    %v415 = vrot.slane %v410, %v414
    %v418 = vsel %vm327, %v401, 0
    %420 = vmatprep.subr.mxu0 0.0
    %421 = vmatpush1.msra.mxu0 %v402
    %422 = vmatprep.subr.mxu0 0.0
    %423 = vmatpush1.msra.mxu0 %v403
    %424 = vmatprep.subr.mxu0 0.0
    %425 = vmatpush1.msra.mxu0 %v404
    %426 = vmatprep.subr.mxu0 0.0
    %427 = vmatpush1.msra.mxu0 %v405
    %428 = vmatprep.subr.mxu0 0.0
    %429 = vmatpush1.msra.mxu0 %v406
    %430 = vmatprep.subr.mxu0 0.0
    %431 = vmatpush1.msra.mxu0 %v407
    %432 = vmatprep.subr.mxu0 0.0
    %433 = vmatpush1.msra.mxu0 %v408
    %434 = vmatprep.subr.mxu0 0.0
    %435 = vmatpush1.msra.mxu0 %v409
    %436 = vmatprep.subr.mxu0 0.0
    %437 = vmatpush1.msra.mxu0 0.0
    %438 = vmatprep.subr.mxu0 0.0
    %439 = vmatpush1.msra.mxu0 0.0
    %440 = vmatprep.subr.mxu0 0.0
    %441 = vmatpush1.msra.mxu0 0.0
    %442 = vmatprep.subr.mxu0 0.0
    %443 = vmatpush1.msra.mxu0 0.0
    %444 = vmatprep.subr.mxu0 0.0
    %445 = vmatpush1.msra.mxu0 0.0
    %446 = vmatprep.subr.mxu0 0.0
    %447 = vmatpush1.msra.mxu0 0.0
    %448 = vmatprep.subr.mxu0 0.0
    %449 = vmatpush1.msra.mxu0 0.0
    %450 = vmatprep.subr.mxu0 0.0
    %451 = vmatpush1.msra.mxu0 0.0
    %452 = vmatprep.subr.mxu0 0.0
    %453 = vmatpush1.msra.mxu0 0.0
    %454 = vmatprep.subr.mxu0 0.0
    %455 = vmatpush1.msra.mxu0 0.0
    %456 = vmatprep.subr.mxu0 0.0
    %457 = vmatpush1.msra.mxu0 0.0
    %458 = vmatprep.subr.mxu0 0.0
    %459 = vmatpush1.msra.mxu0 0.0
    %460 = vmatprep.subr.mxu0 0.0
    %461 = vmatpush1.msra.mxu0 0.0
    %462 = vmatprep.subr.mxu0 0.0
    %463 = vmatpush1.msra.mxu0 0.0
    %464 = vmatprep.subr.mxu0 0.0
    %465 = vmatpush1.msra.mxu0 0.0
    %466 = vmatprep.subr.mxu0 0.0
    %467 = vmatpush1.msra.mxu0 0.0
    %468 = vmatprep.subr.mxu0 0.0
    %469 = vmatpush1.msra.mxu0 0.0
    %470 = vmatprep.subr.mxu0 0.0
    %471 = vmatpush1.msra.mxu0 0.0
    %472 = vmatprep.subr.mxu0 0.0
    %473 = vmatpush1.msra.mxu0 0.0
    %474 = vmatprep.subr.mxu0 0.0
    %475 = vmatpush1.msra.mxu0 0.0
    %476 = vmatprep.subr.mxu0 0.0
    %477 = vmatpush1.msra.mxu0 0.0
    %478 = vmatprep.subr.mxu0 0.0
    %479 = vmatpush1.msra.mxu0 0.0
    %480 = vmatprep.subr.mxu0 0.0
    %481 = vmatpush1.msra.mxu0 0.0
    %482 = vmatprep.subr.mxu0 0.0
    %483 = vmatpush1.msra.mxu0 0.0
    %484 = vmatprep.mubr.f32.mxu0 0.0
    %485 = vmatmul.mubr.f32.gmra.mrb[0].mxu0 %v418
    %v486 = vpop.f32.mrb[0].mxu0
    %v487 = vadd.f32 %v415, %v486
    %v488 = vpop.f32.mrb[0].mxu0
    %489 = vdwg.mxu0
    %vm490 = vcmask 15360
    %491 = vst.msk [vmem:[#allocation17] sm:$0xff] %vm490, %v487
    // Predicated region
    $region74: #{tpu_custom_call.1} parent=1 // pred_check
      _
    $region75: #{tpu_custom_call.1} parent=1 // pred_check_branch
      %493 = sbr.rel (0) target = $region77
    $region76: #{tpu_custom_call.1} parent=1 // pred_region
      %s495 = ssub.s32 128, 128
      %496 = vsyncadd [#allocation4], %s495
      %s498 = sshll.u32 [#allocation17], 4
      %s499 = int_to_ptr.vmem [resolvable:$true] %s498
      %501 = dma.vmem_to_hbm [thread:$0]  %s499, 128, %s9, [#allocation4]
    $region77: #{tpu_custom_call.1} parent=1 // pred_fallthru
      _
    // Predicated region
    $region78: #{tpu_custom_call.1} parent=1 // pred_check
      _
    $region79: #{tpu_custom_call.1} parent=1 // pred_check_branch
      %503 = sbr.rel (0) target = $region81
    $region80: #{tpu_custom_call.1} parent=1 // pred_region
      %504 = dma.done [#allocation4], 128
    $region81: #{tpu_custom_call.1} parent=1 // pred_fallthru
      _
    %505 = vsyncpa [#allocation3], 1
    %506 = vsyncpa [#allocation6], 1
    %507 = vsyncpa [#allocation9], 1
    %508 = vsyncpa [#allocation12], 1
    %509 = vsyncpa [#allocation15], 1
    %510 = vsyncpa [#allocation4], 1

</llo_original>
